<compile_context>
chip_gen: v7x
topology: tpu7x:2x2x1
jax: 0.10.0
libtpu: 0.0.40
codegen_flags: <defaults>
</compile_context>

<pallas_src>
import jax
import jax.numpy as jnp
from jax.experimental import pallas as pl
from jax.experimental.pallas import tpu as pltpu


def _se_kernel(x_ref, w1_ref, w2_ref, o_ref):
    # x_ref block: (1, L, C); weights (C, H) and (H, C) fully resident in VMEM.
    x = x_ref[0]                                               # (L, C)
    pooled = jnp.mean(x, axis=0, keepdims=True)                # (1, C)  == AdaptiveAvgPool1d(1)
    h = jnp.dot(pooled, w1_ref[...], preferred_element_type=jnp.float32)
    h = jnp.maximum(h, 0.0)                                    # ReLU
    y = jnp.dot(h, w2_ref[...], preferred_element_type=jnp.float32)
    y = jax.nn.sigmoid(y)                                      # (1, C) channel gate (EUP)
    o_ref[0] = x * y                                           # broadcast over L


def se_layer(x, w1, w2):
    """x: (B, L, C); w1: (C, C//r); w2: (C//r, C).  Returns (B, L, C)."""
    B, L, C = x.shape
    H = w1.shape[1]
    return pl.pallas_call(
        _se_kernel,
        out_shape=jax.ShapeDtypeStruct((B, L, C), jnp.float32),
        grid=(B,),
        in_specs=[
            pl.BlockSpec((1, L, C), lambda b: (b, 0, 0)),   # one batch element per step
            pl.BlockSpec((C, H), lambda b: (0, 0)),         # weights resident across grid
            pl.BlockSpec((H, C), lambda b: (0, 0)),
        ],
        out_specs=pl.BlockSpec((1, L, C), lambda b: (b, 0, 0)),
        compiler_params=pltpu.CompilerParams(
            dimension_semantics=("parallel",)),             # v7x: shard batch across 2 TCs
    )(x, w1, w2)


def se_layer_ref(x, w1, w2):
    """Pure-JAX reference mirroring the PyTorch SELayer forward."""
    pooled = jnp.mean(x, axis=1)                               # (B, C)
    h = jnp.maximum(pooled @ w1, 0.0)
    y = jax.nn.sigmoid(h @ w2)                                 # (B, C)
    return x * y[:, None, :]


if __name__ == "__main__":
    key = jax.random.PRNGKey(0)
    kx, k1, k2 = jax.random.split(key, 3)

    B, L, C, reduction = 2, 16, 32, 4
    H = C // reduction

    x = jax.random.normal(kx, (B, L, C), jnp.float32)
    # PyTorch nn.Linear(C, H, bias=False) stores its weight as (H, C); we keep
    # the transposed (C, H) layout so the kernel computes pooled @ w1 directly.
    w1 = jax.random.normal(k1, (C, H), jnp.float32) * 0.1
    w2 = jax.random.normal(k2, (H, C), jnp.float32) * 0.1

    out = jax.jit(se_layer)(x, w1, w2)
    jax.block_until_ready(out)

    ref = se_layer_ref(x, w1, w2)
    assert out.shape == (B, L, C), out.shape
    assert bool(jnp.all(jnp.isfinite(out)))
    assert bool(jnp.allclose(out, ref, atol=1e-5, rtol=1e-5)), \
        float(jnp.max(jnp.abs(out - ref)))
    print("KERNEL_OK")
</pallas_src>

<mosaic_0001>
module attributes {stable_mosaic.version = 11 : i64} {
  func.func @_se_kernel(%arg0: i32, %arg1: memref<1x16x32xf32, #tpu.memory_space<vmem>>, %arg2: memref<32x8xf32, #tpu.memory_space<vmem>>, %arg3: memref<8x32xf32, #tpu.memory_space<vmem>>, %arg4: memref<1x16x32xf32, #tpu.memory_space<vmem>>) attributes {dimension_semantics = [#tpu.dimension_semantics<parallel>], iteration_bounds = array<i64: 2>, scalar_prefetch = 0 : i64, scratch_operands = 0 : i64, tpu.core_type = #tpu.core_type<tc>, window_params = [{transform_indices = @transform_0, window_bounds = array<i64: 1, 16, 32>}, {pipeline_mode = #tpu.pipeline_mode<synchronous>, transform_indices = @transform_1, window_bounds = array<i64: 32, 8>}, {pipeline_mode = #tpu.pipeline_mode<synchronous>, transform_indices = @transform_2, window_bounds = array<i64: 8, 32>}, {transform_indices = @transform_3, window_bounds = array<i64: 1, 16, 32>}]} {
    %c0 = arith.constant 0 : index
    %c0_0 = arith.constant 0 : index
    %c0_1 = arith.constant 0 : index
    %0 = vector.load %arg1[%c0, %c0_0, %c0_1] : memref<1x16x32xf32, #tpu.memory_space<vmem>>, vector<1x16x32xf32>
    %1 = vector.shape_cast %0 : vector<1x16x32xf32> to vector<16x32xf32>
    %cst = arith.constant dense<0.000000e+00> : vector<32xf32>
    %2 = vector.multi_reduction <add>, %1, %cst [0] : vector<16x32xf32> to vector<32xf32>
    %3 = vector.shape_cast %2 : vector<32xf32> to vector<1x32xf32>
    %cst_2 = arith.constant 1.600000e+01 : f32
    %4 = vector.broadcast %cst_2 : f32 to vector<1x32xf32>
    %5 = arith.divf %3, %4 : vector<1x32xf32>
    %c0_3 = arith.constant 0 : index
    %c0_4 = arith.constant 0 : index
    %6 = vector.load %arg2[%c0_3, %c0_4] : memref<32x8xf32, #tpu.memory_space<vmem>>, vector<32x8xf32>
    %cst_5 = arith.constant dense<0.000000e+00> : vector<1x8xf32>
    %7 = tpu.matmul %5, %6, %cst_5 {dimension_numbers = #tpu.dot_dimension_numbers<[1], [0], [0], [1], [0, 0, 1, 1], [], []>} : vector<1x32xf32>, vector<32x8xf32>, vector<1x8xf32> -> vector<1x8xf32>
    %cst_6 = arith.constant 0.000000e+00 : f32
    %8 = vector.broadcast %cst_6 : f32 to vector<1x8xf32>
    %9 = arith.maximumf %7, %8 : vector<1x8xf32>
    %c0_7 = arith.constant 0 : index
    %c0_8 = arith.constant 0 : index
    %10 = vector.load %arg3[%c0_7, %c0_8] : memref<8x32xf32, #tpu.memory_space<vmem>>, vector<8x32xf32>
    %cst_9 = arith.constant dense<0.000000e+00> : vector<1x32xf32>
    %11 = tpu.matmul %9, %10, %cst_9 {dimension_numbers = #tpu.dot_dimension_numbers<[1], [0], [0], [1], [0, 0, 1, 1], [], []>} : vector<1x8xf32>, vector<8x32xf32>, vector<1x32xf32> -> vector<1x32xf32>
    %12 = arith.negf %11 : vector<1x32xf32>
    %13 = math.exp %12 : vector<1x32xf32>
    %cst_10 = arith.constant 1.000000e+00 : f32
    %14 = vector.broadcast %cst_10 : f32 to vector<1x32xf32>
    %15 = arith.addf %14, %13 : vector<1x32xf32>
    %16 = arith.divf %14, %15 : vector<1x32xf32>
    %17 = vector.broadcast %16 : vector<1x32xf32> to vector<16x32xf32>
    %18 = arith.mulf %1, %17 : vector<16x32xf32>
    %c0_11 = arith.constant 0 : index
    %c0_12 = arith.constant 0 : index
    %c0_13 = arith.constant 0 : index
    %19 = vector.load %arg4[%c0_11, %c0_12, %c0_13] : memref<1x16x32xf32, #tpu.memory_space<vmem>>, vector<1x16x32xf32>
    %20 = vector.shape_cast %19 : vector<1x16x32xf32> to vector<16x32xf32>
    %21 = vector.shape_cast %18 : vector<16x32xf32> to vector<1x16x32xf32>
    tpu.vector_store %arg4[%c0_11, %c0_12, %c0_13], %21 {strides = array<i32>} : memref<1x16x32xf32, #tpu.memory_space<vmem>>, vector<1x16x32xf32>,
    return
  }
  func.func @transform_0(%arg0: i32) -> (i32, i32, i32) {
    %c0_i32 = arith.constant 0 : i32
    %c0_i32_0 = arith.constant 0 : i32
    %c0_i32_1 = arith.constant 0 : i32
    return %arg0, %c0_i32, %c0_i32_0 : i32, i32, i32
  }
  func.func @transform_1(%arg0: i32) -> (i32, i32) {
    %c0_i32 = arith.constant 0 : i32
    %c0_i32_0 = arith.constant 0 : i32
    %c0_i32_1 = arith.constant 0 : i32
    return %c0_i32, %c0_i32_0 : i32, i32
  }
  func.func @transform_2(%arg0: i32) -> (i32, i32) {
    %c0_i32 = arith.constant 0 : i32
    %c0_i32_0 = arith.constant 0 : i32
    %c0_i32_1 = arith.constant 0 : i32
    return %c0_i32, %c0_i32_0 : i32, i32
  }
  func.func @transform_3(%arg0: i32) -> (i32, i32, i32) {
    %c0_i32 = arith.constant 0 : i32
    %c0_i32_0 = arith.constant 0 : i32
    %c0_i32_1 = arith.constant 0 : i32
    return %arg0, %c0_i32, %c0_i32_0 : i32, i32, i32
  }
}

</mosaic_0001>

<llo_original>
// kernel: se_layer.1
$region0: #{se_layer.1}
  #allocation0 [shape = 'u32[]', space=smem, size = 0x4, offset = 0x4, fixed_abs, tag = 'smem constant byte address 0x4 - core index']
  #allocation1 [shape = 'u32[144,128]{1,0:T(1,128)}', space=vmem, size = 0x12000, scoped, tag = 'internal scratch']
  %s0 = inlined_call_operand.vmem [shape: f32[2,16,32], index: 0, kind: input, shape index: {}]
  %s1 = inlined_call_operand.vmem [shape: f32[32,8], index: 1, kind: input, shape index: {}]
  %s2 = inlined_call_operand.vmem [shape: f32[8,32], index: 2, kind: input, shape index: {}]
  %s3 = inlined_call_operand.hbm [shape: f32[2,16,32], index: 3, kind: output, shape index: {}]
  %s4 = sld [smem:[#allocation0]]
  $region45: #{se_layer.1} parent=0
    _
  %s6 = ssub.s32 1, %s4
  %s7 = scalar_select 0, %s6, %s4
  $region1: #{se_layer.1} parent=0
    #allocation2 [shape = 'u8[16384]{0}', space=vmem, size = 0x4000, scoped, tag = 'output window, operand 0']
    #allocation3 [shape = 's32[2]{0}', space=sflag, size = 0x8, scoped, tag = 'scoped memory for se_layer.1']
    %8 = vsyncpa [#allocation3], 0
    %s9 = scalar_lea.sflag [#allocation3], 1
    %10 = vsyncpa %s9, 0
    loop: start=0, step=1, limit=4
    $region2: #{se_layer.1} parent=1 // loop_pre_header
      _
    $region3: #{se_layer.1} parent=1 // loop_header
      %s12 = sphi 0, %s16
      %p13 = scmp.ge.s32.totalorder %s12, 4
      %s22 = sphi 0, %s24
      %s25 = sphi 0, %s22
      %s26 = sphi 0, %s25
      %s42 = sphi 0, %s26
      %s46 = sphi 0, %s46
      %s48 = sphi 0, %s46
      %s49 = sphi 0, %s48
      %s63 = sphi 0, %s49
      %s67 = sphi 0, %s67
      %s69 = sphi 0, %s67
      %s70 = sphi 0, %s69
      %s84 = sphi 0, %s70
      %s90 = sphi 0, %s92
      %s93 = sphi 0, %s90
      %s94 = sphi 0, %s93
      %s110 = sphi 0, %s94
    $region4: #{se_layer.1} parent=1 // loop_header_branch
      %15 = sbr.rel (%p13) target = $region8
    $region5: #{se_layer.1} parent=1 // loop_body
      %s17 = ssub.s32 %s12, 1
      %s18 = ssub.s32 %s12, 2
      %s19 = sadd.s32 %s12, 1
      %s20 = ssub.s32 %s12, %s19
      %p21 = scmp.eq.s32.totalorder %s20, 0
      %s23 = sadd.s32 %s22, 1
      %s24 = scalar_select %p21, %s22, %s23
      %p27 = pneg %p21
      %p28 = scmp.eq.s32.totalorder %s12, 1
      %p29 = por %p27, %p28
      %p30 = scmp.ne.s32.totalorder %s22, %s25
      %p31 = scmp.eq.s32.totalorder %s12, 0
      %p32 = por %p30, %p31
      %p33 = scmp.ne.s32.totalorder %s22, %s25
      %p34 = scmp.eq.s32.totalorder %s17, 1
      %p35 = por %p33, %p34
      %p36 = scmp.ne.s32.totalorder %s25, %s26
      %p37 = scmp.eq.s32.totalorder %s17, 0
      %p38 = por %p36, %p37
      %p39 = scmp.ne.s32.totalorder %s25, %s26
      %p40 = scmp.eq.s32.totalorder %s18, 1
      %p41 = por %p39, %p40
      %p43 = scmp.ne.s32.totalorder %s26, %s42
      %p44 = scmp.eq.s32.totalorder %s18, 0
      %p45 = por %p43, %p44
      %s47 = sadd.s32 %s46, 1
      %p50 = scmp.eq.s32.totalorder %s12, 1
      %p51 = scmp.ne.s32.totalorder %s46, %s48
      %p52 = scmp.eq.s32.totalorder %s12, 0
      %p53 = por %p51, %p52
      %p54 = scmp.ne.s32.totalorder %s46, %s48
      %p55 = scmp.eq.s32.totalorder %s17, 1
      %p56 = por %p54, %p55
      %p57 = scmp.ne.s32.totalorder %s48, %s49
      %p58 = scmp.eq.s32.totalorder %s17, 0
      %p59 = por %p57, %p58
      %p60 = scmp.ne.s32.totalorder %s48, %s49
      %p61 = scmp.eq.s32.totalorder %s18, 1
      %p62 = por %p60, %p61
      %p64 = scmp.ne.s32.totalorder %s49, %s63
      %p65 = scmp.eq.s32.totalorder %s18, 0
      %p66 = por %p64, %p65
      %s68 = sadd.s32 %s67, 1
      %p71 = scmp.eq.s32.totalorder %s12, 1
      %p72 = scmp.ne.s32.totalorder %s67, %s69
      %p73 = scmp.eq.s32.totalorder %s12, 0
      %p74 = por %p72, %p73
      %p75 = scmp.ne.s32.totalorder %s67, %s69
      %p76 = scmp.eq.s32.totalorder %s17, 1
      %p77 = por %p75, %p76
      %p78 = scmp.ne.s32.totalorder %s69, %s70
      %p79 = scmp.eq.s32.totalorder %s17, 0
      %p80 = por %p78, %p79
      %p81 = scmp.ne.s32.totalorder %s69, %s70
      %p82 = scmp.eq.s32.totalorder %s18, 1
      %p83 = por %p81, %p82
      %p85 = scmp.ne.s32.totalorder %s70, %s84
      %p86 = scmp.eq.s32.totalorder %s18, 0
      %p87 = por %p85, %p86
      %s88 = ssub.s32 %s12, %s19
      %p89 = scmp.eq.s32.totalorder %s88, 0
      %s91 = sadd.s32 %s90, 1
      %s92 = scalar_select %p89, %s90, %s91
      %p95 = pneg %p89
      %p96 = scmp.eq.s32.totalorder %s12, 1
      %p97 = por %p95, %p96
      %p98 = scmp.ne.s32.totalorder %s90, %s93
      %p99 = scmp.eq.s32.totalorder %s12, 0
      %p100 = por %p98, %p99
      %p101 = scmp.ne.s32.totalorder %s90, %s93
      %p102 = scmp.eq.s32.totalorder %s17, 1
      %p103 = por %p101, %p102
      %p104 = scmp.ne.s32.totalorder %s93, %s94
      %p105 = scmp.eq.s32.totalorder %s17, 0
      %p106 = por %p104, %p105
      %p107 = scmp.ne.s32.totalorder %s93, %s94
      %p108 = scmp.eq.s32.totalorder %s18, 1
      %p109 = por %p107, %p108
      %p111 = scmp.ne.s32.totalorder %s94, %s110
      %p112 = scmp.eq.s32.totalorder %s18, 0
      %p113 = por %p111, %p112
      %p114 = scmp.le.s32.totalorder 1, %s12
      %p115 = scmp.lt.s32.totalorder %s12, 3
      %p116 = pnand %p114, %p115
      %p117 = pneg %p116
      // Predicated region
      $region9: #{se_layer.1} parent=5 // pred_check
        _
      $region10: #{se_layer.1} parent=5 // pred_check_branch
        %119 = sbr.rel (%p116) target = $region12
      $region11: #{se_layer.1} parent=5 // pred_region
        %s120 = ssub.s32 %s12, 1
        // Predicated region
        $region13: #{se_layer.1} parent=11 // pred_check
          %p121 = pneg %p59
        $region14: #{se_layer.1} parent=11 // pred_check_branch
          %123 = sbr.rel (%p121) target = $region16
        $region15: #{se_layer.1} parent=11 // pred_region
          _
        $region16: #{se_layer.1} parent=11 // pred_fallthru
          _
        // Predicated region
        $region17: #{se_layer.1} parent=11 // pred_check
          %p124 = pneg %p80
        $region18: #{se_layer.1} parent=11 // pred_check_branch
          %126 = sbr.rel (%p124) target = $region20
        $region19: #{se_layer.1} parent=11 // pred_region
          _
        $region20: #{se_layer.1} parent=11 // pred_fallthru
          _
      $region12: #{se_layer.1} parent=5 // pred_fallthru
        _
      %p127 = scmp.lt.s32.totalorder %s12, 2
      // Predicated region
      $region21: #{se_layer.1} parent=5 // pred_check
        %p128 = pneg %p127
      $region22: #{se_layer.1} parent=5 // pred_check_branch
        %130 = sbr.rel (%p128) target = $region24
      $region23: #{se_layer.1} parent=5 // pred_region
        // Predicated region
        $region25: #{se_layer.1} parent=23 // pred_check
          %p131 = pneg %p32
        $region26: #{se_layer.1} parent=23 // pred_check_branch
          %133 = sbr.rel (%p131) target = $region28
        $region27: #{se_layer.1} parent=23 // pred_region
          %p134 = scmp.lt.s32.totalorder %s12, 1
          %s135 = scalar_select %p134, %s12, 1
          %s136 = smul.addr %s135, 2
          %s137 = smul.addr %s136, 8
          %s138 = scalar_lea.vmem %s0, %s137
        $region28: #{se_layer.1} parent=23 // pred_fallthru
          _
      $region24: #{se_layer.1} parent=5 // pred_fallthru
        _
      %p139 = scmp.le.s32.totalorder 1, %s12
      %p140 = scmp.lt.s32.totalorder %s12, 3
      %p141 = pnand %p139, %p140
      %p142 = pneg %p141
      // Predicated region
      $region29: #{se_layer.1} parent=5 // pred_check
        _
      $region30: #{se_layer.1} parent=5 // pred_check_branch
        %144 = sbr.rel (%p141) target = $region32
      $region31: #{se_layer.1} parent=5 // pred_region
        %s145 = ssub.s32 %s12, 1
        %p146 = scmp.lt.s32.totalorder %s17, 1
        %s147 = scalar_select %p146, %s17, 1
        %s148 = smul.addr %s147, 2
        %s149 = smul.addr %s148, 8
        %s150 = scalar_lea.vmem %s0, %s149
        %p151 = pneg %p38
        %p152 = pneg %p35
        %p153 = pneg %p59
        %p154 = pneg %p56
        %p155 = pneg %p80
        %p156 = pneg %p77
        %p157 = pneg %p106
        %p158 = pneg %p103
        %s159 = sand.u32 %s93, 1
        %s160 = scalar_lea.sflag [#allocation3], %s159
        %s161 = sand.u32 %s93, 1
        %s162 = smul.addr %s161, 16
        %s163 = scalar_lea.vmem [#allocation2], %s162
        %p164 = scmp.lt.s32.totalorder %s17, 1
        %s165 = scalar_select %p164, %s17, 1
        %s166 = smul.addr %s165, 2
        %s167 = smul.addr %s166, 8
        %s168 = scalar_lea.vmem %s0, %s167
        %v169 = vld [vmem:[%s168] sm:$0xff]
        %v170 = vld [vmem:[%s168 + $0x8] sm:$0xff]
        %vm171 = vcmask 261120
        %v172 = vsel %vm171, %v169, 0.0
        %v173 = vsel %vm171, %v170, 0.0
        %v174 = vadd.f32 %v172, %v173
        %v175 = vrot.slane %v174, 4
        %v176 = vadd.f32 %v174, %v175
        %v177 = vrot.slane %v176, 2
        %v178 = vadd.f32 %v176, %v177
        %v179 = vrot.slane %v178, 1
        %v180 = vadd.f32 %v178, %v179
        %v181 = vrcp.pop 16.0
        %v182 = vmul.f32 %v180, %v181
        %v183 = vld [vmem:[%s1] sm:$0xff]
        %v184 = vld [vmem:[%s1 + $0x8] sm:$0xff]
        %v185 = vld [vmem:[%s1 + $0x10] sm:$0xff]
        %v186 = vld [vmem:[%s1 + $0x18] sm:$0xff]
        %v188 = vsel %vm171, %v182, 0
        %190 = vmatprep.subr.mxu0 0.0
        %191 = vmatpush1.msra.mxu0 %v183
        %192 = vmatprep.subr.mxu0 0.0
        %193 = vmatpush1.msra.mxu0 %v184
        %194 = vmatprep.subr.mxu0 0.0
        %195 = vmatpush1.msra.mxu0 %v185
        %196 = vmatprep.subr.mxu0 0.0
        %197 = vmatpush1.msra.mxu0 %v186
        %198 = vmatprep.subr.mxu0 0.0
        %199 = vmatpush1.msra.mxu0 0.0
        %200 = vmatprep.subr.mxu0 0.0
        %201 = vmatpush1.msra.mxu0 0.0
        %202 = vmatprep.subr.mxu0 0.0
        %203 = vmatpush1.msra.mxu0 0.0
        %204 = vmatprep.subr.mxu0 0.0
        %205 = vmatpush1.msra.mxu0 0.0
        %206 = vmatprep.subr.mxu0 0.0
        %207 = vmatpush1.msra.mxu0 0.0
        %208 = vmatprep.subr.mxu0 0.0
        %209 = vmatpush1.msra.mxu0 0.0
        %210 = vmatprep.subr.mxu0 0.0
        %211 = vmatpush1.msra.mxu0 0.0
        %212 = vmatprep.subr.mxu0 0.0
        %213 = vmatpush1.msra.mxu0 0.0
        %214 = vmatprep.subr.mxu0 0.0
        %215 = vmatpush1.msra.mxu0 0.0
        %216 = vmatprep.subr.mxu0 0.0
        %217 = vmatpush1.msra.mxu0 0.0
        %218 = vmatprep.subr.mxu0 0.0
        %219 = vmatpush1.msra.mxu0 0.0
        %220 = vmatprep.subr.mxu0 0.0
        %221 = vmatpush1.msra.mxu0 0.0
        %222 = vmatprep.subr.mxu0 0.0
        %223 = vmatpush1.msra.mxu0 0.0
        %224 = vmatprep.subr.mxu0 0.0
        %225 = vmatpush1.msra.mxu0 0.0
        %226 = vmatprep.subr.mxu0 0.0
        %227 = vmatpush1.msra.mxu0 0.0
        %228 = vmatprep.subr.mxu0 0.0
        %229 = vmatpush1.msra.mxu0 0.0
        %230 = vmatprep.subr.mxu0 0.0
        %231 = vmatpush1.msra.mxu0 0.0
        %232 = vmatprep.subr.mxu0 0.0
        %233 = vmatpush1.msra.mxu0 0.0
        %234 = vmatprep.subr.mxu0 0.0
        %235 = vmatpush1.msra.mxu0 0.0
        %236 = vmatprep.subr.mxu0 0.0
        %237 = vmatpush1.msra.mxu0 0.0
        %238 = vmatprep.subr.mxu0 0.0
        %239 = vmatpush1.msra.mxu0 0.0
        %240 = vmatprep.subr.mxu0 0.0
        %241 = vmatpush1.msra.mxu0 0.0
        %242 = vmatprep.subr.mxu0 0.0
        %243 = vmatpush1.msra.mxu0 0.0
        %244 = vmatprep.subr.mxu0 0.0
        %245 = vmatpush1.msra.mxu0 0.0
        %246 = vmatprep.subr.mxu0 0.0
        %247 = vmatpush1.msra.mxu0 0.0
        %248 = vmatprep.subr.mxu0 0.0
        %249 = vmatpush1.msra.mxu0 0.0
        %250 = vmatprep.subr.mxu0 0.0
        %251 = vmatpush1.msra.mxu0 0.0
        %252 = vmatprep.subr.mxu0 0.0
        %253 = vmatpush1.msra.mxu0 0.0
        %254 = vmatprep.mubr.f32.mxu0 0.0
        %255 = vmatmul.mubr.f32.gmra.mrb[0].mxu0 %v188
        %v256 = vpop.f32.mrb[0].mxu0
        %v257 = vadd.f32 0.0, %v256
        %v258 = vpop.f32.mrb[0].mxu0
        %259 = vdwg.mxu0
        %v260 = vmax.f32 %v257, 0.0
        %v261 = vld [vmem:[%s2] sm:$0xff]
        %vm262 = vcmask 64512
        %v264 = vsel %vm262, %v260, 0
        %266 = vmatprep.subr.mxu0 0.0
        %267 = vmatpush1.msra.mxu0 %v261
        %268 = vmatprep.subr.mxu0 0.0
        %269 = vmatpush1.msra.mxu0 0.0
        %270 = vmatprep.subr.mxu0 0.0
        %271 = vmatpush1.msra.mxu0 0.0
        %272 = vmatprep.subr.mxu0 0.0
        %273 = vmatpush1.msra.mxu0 0.0
        %274 = vmatprep.subr.mxu0 0.0
        %275 = vmatpush1.msra.mxu0 0.0
        %276 = vmatprep.subr.mxu0 0.0
        %277 = vmatpush1.msra.mxu0 0.0
        %278 = vmatprep.subr.mxu0 0.0
        %279 = vmatpush1.msra.mxu0 0.0
        %280 = vmatprep.subr.mxu0 0.0
        %281 = vmatpush1.msra.mxu0 0.0
        %282 = vmatprep.subr.mxu0 0.0
        %283 = vmatpush1.msra.mxu0 0.0
        %284 = vmatprep.subr.mxu0 0.0
        %285 = vmatpush1.msra.mxu0 0.0
        %286 = vmatprep.subr.mxu0 0.0
        %287 = vmatpush1.msra.mxu0 0.0
        %288 = vmatprep.subr.mxu0 0.0
        %289 = vmatpush1.msra.mxu0 0.0
        %290 = vmatprep.subr.mxu0 0.0
        %291 = vmatpush1.msra.mxu0 0.0
        %292 = vmatprep.subr.mxu0 0.0
        %293 = vmatpush1.msra.mxu0 0.0
        %294 = vmatprep.subr.mxu0 0.0
        %295 = vmatpush1.msra.mxu0 0.0
        %296 = vmatprep.subr.mxu0 0.0
        %297 = vmatpush1.msra.mxu0 0.0
        %298 = vmatprep.subr.mxu0 0.0
        %299 = vmatpush1.msra.mxu0 0.0
        %300 = vmatprep.subr.mxu0 0.0
        %301 = vmatpush1.msra.mxu0 0.0
        %302 = vmatprep.subr.mxu0 0.0
        %303 = vmatpush1.msra.mxu0 0.0
        %304 = vmatprep.subr.mxu0 0.0
        %305 = vmatpush1.msra.mxu0 0.0
        %306 = vmatprep.subr.mxu0 0.0
        %307 = vmatpush1.msra.mxu0 0.0
        %308 = vmatprep.subr.mxu0 0.0
        %309 = vmatpush1.msra.mxu0 0.0
        %310 = vmatprep.subr.mxu0 0.0
        %311 = vmatpush1.msra.mxu0 0.0
        %312 = vmatprep.subr.mxu0 0.0
        %313 = vmatpush1.msra.mxu0 0.0
        %314 = vmatprep.subr.mxu0 0.0
        %315 = vmatpush1.msra.mxu0 0.0
        %316 = vmatprep.subr.mxu0 0.0
        %317 = vmatpush1.msra.mxu0 0.0
        %318 = vmatprep.subr.mxu0 0.0
        %319 = vmatpush1.msra.mxu0 0.0
        %320 = vmatprep.subr.mxu0 0.0
        %321 = vmatpush1.msra.mxu0 0.0
        %322 = vmatprep.subr.mxu0 0.0
        %323 = vmatpush1.msra.mxu0 0.0
        %324 = vmatprep.subr.mxu0 0.0
        %325 = vmatpush1.msra.mxu0 0.0
        %326 = vmatprep.subr.mxu0 0.0
        %327 = vmatpush1.msra.mxu0 0.0
        %328 = vmatprep.subr.mxu0 0.0
        %329 = vmatpush1.msra.mxu0 0.0
        %330 = vmatprep.mubr.f32.mxu0 0.0
        %331 = vmatmul.mubr.f32.gmra.mrb[0].mxu0 %v264
        %v332 = vpop.f32.mrb[0].mxu0
        %v333 = vadd.f32 0.0, %v332
        %v334 = vpop.f32.mrb[0].mxu0
        %335 = vdwg.mxu0
        %v336 = vxor.u32 %v333, 2147483648
        %v337 = vmul.f32 %v336, 1.442695
        %v338 = vpow.pop %v337
        %v339 = vadd.f32 %v338, 1.0
        %v340 = vrcp.pop %v339
        %v341 = vmul.f32 1.0, %v340
        %v342 = vlaneseq
        %v343 = vshrl.u32 %v342, 7
        %v344 = vsub.s32 0, %v343
        %v345 = vrot.slane %v341, %v344
        %v346 = vmul.f32 %v169, %v345
        %v347 = vmul.f32 %v170, %v345
        %348 = vst.msk [vmem:[%s163] sm:$0xff] %vm171, %v346
        %349 = vst.msk [vmem:[%s163 + $0x8] sm:$0xff] %vm171, %v347
        %s350 = sand.u32 %s93, 1
        %s351 = scalar_lea.sflag [#allocation3], %s350
        %s352 = sand.u32 %s93, 1
        %s353 = smul.addr %s352, 16
        %s354 = scalar_lea.vmem [#allocation2], %s353
        // Predicated region
        $region33: #{se_layer.1} parent=31 // pred_check
          %p355 = pneg %p103
        $region34: #{se_layer.1} parent=31 // pred_check_branch
          %357 = sbr.rel (%p355) target = $region36
        $region35: #{se_layer.1} parent=31 // pred_region
          %s359 = ssub.s32 256, 256
          %360 = vsyncadd %s351, %s359
          %s361 = smul.addr %s17, 2
          %s362 = smul.addr %s361, 128
          %s363 = scalar_lea.hbm %s3, %s362
          %s364 = sshll.u32 %s354, 4
          %s365 = int_to_ptr.vmem [resolvable:$true] %s364
          %370 = dma.vmem_to_hbm [thread:$0]  %s365, 256, %s363, %s351, 128, 128, 8
        $region36: #{se_layer.1} parent=31 // pred_fallthru
          _
      $region32: #{se_layer.1} parent=5 // pred_fallthru
        _
      %p371 = scmp.le.s32.totalorder 2, %s12
      // Predicated region
      $region37: #{se_layer.1} parent=5 // pred_check
        %p372 = pneg %p371
      $region38: #{se_layer.1} parent=5 // pred_check_branch
        %374 = sbr.rel (%p372) target = $region40
      $region39: #{se_layer.1} parent=5 // pred_region
        %s375 = ssub.s32 %s12, 2
        // Predicated region
        $region41: #{se_layer.1} parent=39 // pred_check
          %p376 = pneg %p109
        $region42: #{se_layer.1} parent=39 // pred_check_branch
          %378 = sbr.rel (%p376) target = $region44
        $region43: #{se_layer.1} parent=39 // pred_region
          %s379 = sand.u32 %s94, 1
          %s380 = scalar_lea.sflag [#allocation3], %s379
          %s381 = sand.u32 %s94, 1
          %s382 = smul.addr %s381, 16
          %s383 = scalar_lea.vmem [#allocation2], %s382
          %384 = dma.done %s380, 256
        $region44: #{se_layer.1} parent=39 // pred_fallthru
          _
      $region40: #{se_layer.1} parent=5 // pred_fallthru
        _
    $region6: #{se_layer.1} parent=1 // loop_footer
      %s16 = sadd.s32 1, %s12
    $region7: #{se_layer.1} parent=1 // loop_footer_branch
      %11 = sbr.rel target = $region3
    $region8: #{se_layer.1} parent=1 // loop_exit
      _
    %385 = vsyncpa [#allocation3], 1
    %s386 = scalar_lea.sflag [#allocation3], 1
    %387 = vsyncpa %s386, 1

</llo_original>
